<compile_context>
chip_gen: v7x
topology: tpu7x:2x2x1
jax: 0.10.0
libtpu: 0.0.40
codegen_flags: <defaults>
</compile_context>

<pallas_src>
import functools

import jax
import jax.numpy as jnp
from jax.experimental import pallas as pl
from jax.experimental.pallas import tpu as pltpu


def _kv_update_kernel(slot_ref, new_ref, cache_hbm_ref, out_ref, *, scale):
    # slot_ref      : SMEM [T] int32 slot mapping (consumed by the out index_map)
    # new_ref       : VMEM [1, H, D] tile of the incoming key/value token
    # cache_hbm_ref : raw HBM ref of the cache; only present so Pallas can alias
    #                 it with the output -- never read here
    # out_ref       : VMEM [1, H, D] tile that lands at cache[slot_mapping[i]]
    del slot_ref, cache_hbm_ref
    val = new_ref[...]
    if scale != 1.0:                       # quant_input: static per-tensor scale
        val = val.astype(jnp.float32) * scale
    out_ref[...] = val.astype(out_ref.dtype)


def vllm_kv_cache_update(new_kv, cache, slot_mapping, *, input_scale=1.0):
    """cache[slot_mapping[i]] = quant(new_kv[i]); returns the updated cache."""
    num_tokens, num_heads, head_dim = new_kv.shape
    assert cache.shape[1:] == (num_heads, head_dim)
    assert slot_mapping.shape == (num_tokens,)

    kernel = pl.pallas_call(
        functools.partial(_kv_update_kernel, scale=float(input_scale)),
        out_shape=jax.ShapeDtypeStruct(cache.shape, cache.dtype),
        grid_spec=pltpu.PrefetchScalarGridSpec(
            num_scalar_prefetch=1,                 # slot_mapping -> SMEM
            grid=(num_tokens,),
            in_specs=[
                # one full token (all heads x head_dim) per grid step
                pl.BlockSpec((1, num_heads, head_dim),
                             lambda i, slots: (i, 0, 0)),
                # cache stays in HBM, only here to be aliased with the output
                pl.BlockSpec(memory_space=pl.ANY),
            ],
            out_specs=pl.BlockSpec(
                (1, num_heads, head_dim),
                lambda i, slots: (slots[i], 0, 0),  # data-dependent scatter
            ),
        ),
        # call operands are (slot_mapping, new_kv, cache) -> cache is input 2
        input_output_aliases={2: 0},
        compiler_params=pltpu.CompilerParams(
            dimension_semantics=("arbitrary",),
        ),
        cost_estimate=pl.CostEstimate(
            flops=0,
            transcendentals=0,
            bytes_accessed=2 * num_tokens * num_heads * head_dim
            * new_kv.dtype.itemsize,
        ),
    )
    return kernel(slot_mapping, new_kv, cache)


@functools.partial(jax.jit, static_argnames=("input_scale",), donate_argnums=(1,))
def patched_vllm_kv_cache_forward(new_kv, cache, slot_mapping, input_scale=1.0):
    """Forward of PatchedVLLMKVCache for one cache tensor (key or value)."""
    # TODO(synk): quant_output (runtime-configured dequantizer applied to the
    # returned cache) and the MEASURE-mode observers are dynamic config objects
    # with no static Pallas equivalent; only the static-scale quant_input is fused.
    return vllm_kv_cache_update(new_kv, cache, slot_mapping,
                                input_scale=input_scale)


if __name__ == "__main__":
    key = jax.random.PRNGKey(0)
    k0, k1, k2, k3, k4 = jax.random.split(key, 5)

    # Small KV-cache shapes: 128 cache slots, 4 heads, head_dim 32, 8 new tokens.
    num_slots, num_heads, head_dim = 128, 4, 32
    num_tokens = 8
    dtype = jnp.bfloat16

    key_cache = jax.random.normal(
        k0, (num_slots, num_heads, head_dim), jnp.float32).astype(dtype)
    value_cache = jax.random.normal(
        k1, (num_slots, num_heads, head_dim), jnp.float32).astype(dtype)
    new_keys = jax.random.normal(
        k2, (num_tokens, num_heads, head_dim), jnp.float32).astype(dtype)
    new_values = jax.random.normal(
        k3, (num_tokens, num_heads, head_dim), jnp.float32).astype(dtype)
    slot_mapping = jax.random.permutation(
        k4, num_slots)[:num_tokens].astype(jnp.int32)

    # References (computed before the caches are donated to the kernel).
    expected_k = key_cache.at[slot_mapping].set(new_keys)
    expected_v = value_cache.at[slot_mapping].set(
        (new_values.astype(jnp.float32) * 0.5).astype(dtype))

    out_k = patched_vllm_kv_cache_forward(new_keys, key_cache, slot_mapping)
    out_v = patched_vllm_kv_cache_forward(new_values, value_cache, slot_mapping,
                                          input_scale=0.5)
    jax.block_until_ready((out_k, out_v))

    assert out_k.shape == (num_slots, num_heads, head_dim)
    assert out_k.dtype == dtype
    assert bool(jnp.array_equal(out_k, expected_k))
    assert bool(jnp.allclose(out_v.astype(jnp.float32),
                             expected_v.astype(jnp.float32),
                             rtol=1e-2, atol=1e-2))

    print("KERNEL_OK")
</pallas_src>

<mosaic_0001>
module attributes {stable_mosaic.version = 11 : i64} {
  func.func @_kv_update_kernel(%arg0: i32, %arg1: memref<8xi32, #tpu.memory_space<smem>>, %arg2: memref<1x4x32xbf16, #tpu.memory_space<vmem>>, %arg3: memref<128x4x32xbf16, #tpu.memory_space<any>>, %arg4: memref<1x4x32xbf16, #tpu.memory_space<vmem>>) attributes {dimension_semantics = [#tpu.dimension_semantics<arbitrary>], iteration_bounds = array<i64: 8>, scalar_prefetch = 1 : i64, scratch_operands = 0 : i64, tpu.core_type = #tpu.core_type<tc>, window_params = [{transform_indices = @transform_0, window_bounds = array<i64: 1, 4, 32>}, {}, {transform_indices = @transform_2, window_bounds = array<i64: 1, 4, 32>}]} {
    %c0 = arith.constant 0 : index
    %c0_0 = arith.constant 0 : index
    %c0_1 = arith.constant 0 : index
    %0 = vector.load %arg2[%c0, %c0_0, %c0_1] : memref<1x4x32xbf16, #tpu.memory_space<vmem>>, vector<1x4x32xbf16>
    %c0_2 = arith.constant 0 : index
    %c0_3 = arith.constant 0 : index
    %c0_4 = arith.constant 0 : index
    %1 = vector.load %arg4[%c0_2, %c0_3, %c0_4] : memref<1x4x32xbf16, #tpu.memory_space<vmem>>, vector<1x4x32xbf16>
    tpu.vector_store %arg4[%c0_2, %c0_3, %c0_4], %0 {strides = array<i32>} : memref<1x4x32xbf16, #tpu.memory_space<vmem>>, vector<1x4x32xbf16>,
    return
  }
  func.func @transform_0(%arg0: i32, %arg1: memref<8xi32, #tpu.memory_space<smem>>) -> (i32, i32, i32) {
    %c0_i32 = arith.constant 0 : i32
    %c0_i32_0 = arith.constant 0 : i32
    %c0_i32_1 = arith.constant 0 : i32
    return %arg0, %c0_i32, %c0_i32_0 : i32, i32, i32
  }
  func.func @transform_2(%arg0: i32, %arg1: memref<8xi32, #tpu.memory_space<smem>>) -> (i32, i32, i32) {
    %0 = arith.index_cast %arg0 : i32 to index
    %1 = memref.load %arg1[%0] : memref<8xi32, #tpu.memory_space<smem>>
    %c0_i32 = arith.constant 0 : i32
    %c0_i32_0 = arith.constant 0 : i32
    %c0_i32_1 = arith.constant 0 : i32
    return %1, %c0_i32, %c0_i32_0 : i32, i32, i32
  }
}

</mosaic_0001>

<llo_original>
// kernel: patched_vllm_kv_cache_forward.1
$region0: #{patched_vllm_kv_cache_forward.1}
  #allocation0 [shape = 'u32[]', space=smem, size = 0x4, offset = 0x4, fixed_abs, tag = 'smem constant byte address 0x4 - core index']
  #allocation1 [shape = 'u32[144,128]{1,0:T(1,128)}', space=vmem, size = 0x12000, scoped, tag = 'internal scratch']
  #allocation2 [shape = 's32[1]{0}', space=sflag, size = 0x4, scoped, tag = 'scoped memory for patched_vllm_kv_cache_forward.1']
  #allocation3 [shape = 'u8[512]{0}', space=smem, size = 0x200, scoped, tag = 'prefetched SMEM operand 0']
  %s0 = inlined_call_operand.vmem [shape: s32[8], index: 0, kind: input, shape index: {}]
  %s1 = inlined_call_operand.vmem [shape: bf16[8,4,32], index: 1, kind: input, shape index: {}]
  %s2 = inlined_call_operand.vmem [shape: bf16[128,4,32], index: 2, kind: input, shape index: {}, may-alias: {2,3}]
  %s3 = inlined_call_operand.vmem [shape: bf16[128,4,32], index: 3, kind: output, shape index: {}, may-alias: {2,3}]
  %s4 = sld [smem:[#allocation0]]
  $region37: #{patched_vllm_kv_cache_forward.1} parent=0
    _
  %s6 = ssub.s32 1, %s4
  %s7 = scalar_select 0, %s6, %s4
  %s8 = sshll.u32 %s0, 4
  %s9 = int_to_ptr.vmem [resolvable:$true] %s8
  %11 = dma.vmem_to_smem %s9, 16, [#allocation3], [#allocation2]
  %12 = dma.done [#allocation2], 16
  %13 = sfence
  loop: start=0, step=1, limit=10
  $region2: #{patched_vllm_kv_cache_forward.1} parent=0 // loop_pre_header
    _
  $region3: #{patched_vllm_kv_cache_forward.1} parent=0 // loop_header
    %s15 = sphi 0, %s19
    %p16 = scmp.ge.s32.totalorder %s15, 10
    %s25 = sphi 0, %s27
    %s28 = sphi 0, %s25
    %s29 = sphi 0, %s28
    %s45 = sphi 0, %s29
    %s53 = sphi 0, %s55
    %s56 = sphi 0, %s53
    %s57 = sphi 0, %s56
    %s73 = sphi 0, %s57
  $region4: #{patched_vllm_kv_cache_forward.1} parent=0 // loop_header_branch
    %18 = sbr.rel (%p16) target = $region8
  $region5: #{patched_vllm_kv_cache_forward.1} parent=0 // loop_body
    %s20 = ssub.s32 %s15, 1
    %s21 = ssub.s32 %s15, 2
    %s22 = sadd.s32 %s15, 1
    %s23 = ssub.s32 %s15, %s22
    %p24 = scmp.eq.s32.totalorder %s23, 0
    %s26 = sadd.s32 %s25, 1
    %s27 = scalar_select %p24, %s25, %s26
    %p30 = pneg %p24
    %p31 = scmp.eq.s32.totalorder %s15, 7
    %p32 = por %p30, %p31
    %p33 = scmp.ne.s32.totalorder %s25, %s28
    %p34 = scmp.eq.s32.totalorder %s15, 0
    %p35 = por %p33, %p34
    %p36 = scmp.ne.s32.totalorder %s25, %s28
    %p37 = scmp.eq.s32.totalorder %s20, 7
    %p38 = por %p36, %p37
    %p39 = scmp.ne.s32.totalorder %s28, %s29
    %p40 = scmp.eq.s32.totalorder %s20, 0
    %p41 = por %p39, %p40
    %p42 = scmp.ne.s32.totalorder %s28, %s29
    %p43 = scmp.eq.s32.totalorder %s21, 7
    %p44 = por %p42, %p43
    %p46 = scmp.ne.s32.totalorder %s29, %s45
    %p47 = scmp.eq.s32.totalorder %s21, 0
    %p48 = por %p46, %p47
    %s49 = sld [smem:[#allocation3 + %s15]]
    %s50 = sld [smem:[#allocation3 + %s22]]
    %s51 = ssub.s32 %s49, %s50
    %p52 = scmp.eq.s32.totalorder %s51, 0
    %s54 = sadd.s32 %s53, 1
    %s55 = scalar_select %p52, %s53, %s54
    %p58 = pneg %p52
    %p59 = scmp.eq.s32.totalorder %s15, 7
    %p60 = por %p58, %p59
    %p61 = scmp.ne.s32.totalorder %s53, %s56
    %p62 = scmp.eq.s32.totalorder %s15, 0
    %p63 = por %p61, %p62
    %p64 = scmp.ne.s32.totalorder %s53, %s56
    %p65 = scmp.eq.s32.totalorder %s20, 7
    %p66 = por %p64, %p65
    %p67 = scmp.ne.s32.totalorder %s56, %s57
    %p68 = scmp.eq.s32.totalorder %s20, 0
    %p69 = por %p67, %p68
    %p70 = scmp.ne.s32.totalorder %s56, %s57
    %p71 = scmp.eq.s32.totalorder %s21, 7
    %p72 = por %p70, %p71
    %p74 = scmp.ne.s32.totalorder %s57, %s73
    %p75 = scmp.eq.s32.totalorder %s21, 0
    %p76 = por %p74, %p75
    %p77 = scmp.le.s32.totalorder 1, %s15
    %p78 = scmp.lt.s32.totalorder %s15, 9
    %p79 = pnand %p77, %p78
    %p80 = pneg %p79
    // Predicated region
    $region9: #{patched_vllm_kv_cache_forward.1} parent=5 // pred_check
      _
    $region10: #{patched_vllm_kv_cache_forward.1} parent=5 // pred_check_branch
      %82 = sbr.rel (%p79) target = $region12
    $region11: #{patched_vllm_kv_cache_forward.1} parent=5 // pred_region
      %s83 = ssub.s32 %s15, 1
    $region12: #{patched_vllm_kv_cache_forward.1} parent=5 // pred_fallthru
      _
    %p84 = scmp.lt.s32.totalorder %s15, 8
    // Predicated region
    $region13: #{patched_vllm_kv_cache_forward.1} parent=5 // pred_check
      %p85 = pneg %p84
    $region14: #{patched_vllm_kv_cache_forward.1} parent=5 // pred_check_branch
      %87 = sbr.rel (%p85) target = $region16
    $region15: #{patched_vllm_kv_cache_forward.1} parent=5 // pred_region
      // Predicated region
      $region17: #{patched_vllm_kv_cache_forward.1} parent=15 // pred_check
        %p88 = pneg %p35
      $region18: #{patched_vllm_kv_cache_forward.1} parent=15 // pred_check_branch
        %90 = sbr.rel (%p88) target = $region20
      $region19: #{patched_vllm_kv_cache_forward.1} parent=15 // pred_region
        %p91 = scmp.lt.s32.totalorder %s15, 7
        %s92 = scalar_select %p91, %s15, 7
        %s93 = smul.addr %s92, 2
        %s94 = scalar_lea.vmem %s1, %s93
      $region20: #{patched_vllm_kv_cache_forward.1} parent=15 // pred_fallthru
        _
    $region16: #{patched_vllm_kv_cache_forward.1} parent=5 // pred_fallthru
      _
    %p95 = scmp.le.s32.totalorder 1, %s15
    %p96 = scmp.lt.s32.totalorder %s15, 9
    %p97 = pnand %p95, %p96
    %p98 = pneg %p97
    // Predicated region
    $region21: #{patched_vllm_kv_cache_forward.1} parent=5 // pred_check
      _
    $region22: #{patched_vllm_kv_cache_forward.1} parent=5 // pred_check_branch
      %100 = sbr.rel (%p97) target = $region24
    $region23: #{patched_vllm_kv_cache_forward.1} parent=5 // pred_region
      %s101 = ssub.s32 %s15, 1
      %p102 = scmp.lt.s32.totalorder %s20, 7
      %s103 = scalar_select %p102, %s20, 7
      %s104 = smul.addr %s103, 2
      %s105 = scalar_lea.vmem %s1, %s104
      %p106 = pneg %p41
      %p107 = pneg %p38
      %p108 = pneg %p69
      %p109 = pneg %p66
      %s110 = sld [smem:[#allocation3 + %s20]]
      %p111 = scmp.lt.s32.totalorder %s110, 127
      %s112 = scalar_select %p111, %s110, 127
      %s113 = smul.addr %s112, 2
      %s114 = scalar_lea.vmem %s3, %s113
      %p115 = scmp.lt.s32.totalorder %s20, 7
      %s116 = scalar_select %p115, %s20, 7
      %s117 = smul.addr %s116, 2
      %s118 = scalar_lea.vmem %s1, %s117
      %s119 = sld [smem:[#allocation3 + %s20]]
      %p120 = scmp.lt.s32.totalorder %s119, 127
      %s121 = scalar_select %p120, %s119, 127
      %s122 = smul.addr %s121, 2
      %s123 = scalar_lea.vmem %s3, %s122
      %s124 = sld [smem:[#allocation3 + %s20]]
      %v125 = vld [vmem:[%s118] sm:$0x3]
      %vm126 = vcmask 254976
      %127 = vst.msk [vmem:[%s123] sm:$0x3] %vm126, %v125
      %s128 = sld [smem:[#allocation3 + %s20]]
      %p129 = scmp.lt.s32.totalorder %s128, 127
      %s130 = scalar_select %p129, %s128, 127
      %s131 = smul.addr %s130, 2
      %s132 = scalar_lea.vmem %s3, %s131
      // Predicated region
      $region25: #{patched_vllm_kv_cache_forward.1} parent=23 // pred_check
        %p133 = pneg %p66
      $region26: #{patched_vllm_kv_cache_forward.1} parent=23 // pred_check_branch
        %135 = sbr.rel (%p133) target = $region28
      $region27: #{patched_vllm_kv_cache_forward.1} parent=23 // pred_region
        %s136 = sld [smem:[#allocation3 + %s20]]
      $region28: #{patched_vllm_kv_cache_forward.1} parent=23 // pred_fallthru
        _
    $region24: #{patched_vllm_kv_cache_forward.1} parent=5 // pred_fallthru
      _
    %p137 = scmp.le.s32.totalorder 2, %s15
    // Predicated region
    $region29: #{patched_vllm_kv_cache_forward.1} parent=5 // pred_check
      %p138 = pneg %p137
    $region30: #{patched_vllm_kv_cache_forward.1} parent=5 // pred_check_branch
      %140 = sbr.rel (%p138) target = $region32
    $region31: #{patched_vllm_kv_cache_forward.1} parent=5 // pred_region
      %s141 = ssub.s32 %s15, 2
      // Predicated region
      $region33: #{patched_vllm_kv_cache_forward.1} parent=31 // pred_check
        %p142 = pneg %p72
      $region34: #{patched_vllm_kv_cache_forward.1} parent=31 // pred_check_branch
        %144 = sbr.rel (%p142) target = $region36
      $region35: #{patched_vllm_kv_cache_forward.1} parent=31 // pred_region
        %s145 = sld [smem:[#allocation3 + %s21]]
        %p146 = scmp.lt.s32.totalorder %s145, 127
        %s147 = scalar_select %p146, %s145, 127
        %s148 = smul.addr %s147, 2
        %s149 = scalar_lea.vmem %s3, %s148
      $region36: #{patched_vllm_kv_cache_forward.1} parent=31 // pred_fallthru
        _
    $region32: #{patched_vllm_kv_cache_forward.1} parent=5 // pred_fallthru
      _
  $region6: #{patched_vllm_kv_cache_forward.1} parent=0 // loop_footer
    %s19 = sadd.s32 1, %s15
  $region7: #{patched_vllm_kv_cache_forward.1} parent=0 // loop_footer_branch
    %14 = sbr.rel target = $region3
  $region8: #{patched_vllm_kv_cache_forward.1} parent=0 // loop_exit
    _

</llo_original>
